<compile_context>
chip_gen: v5e
topology: v5e:2x2
jax: 0.10.0
libtpu: 0.0.40
codegen_flags: <defaults>
</compile_context>

<pallas_src>
import functools

import jax
import jax.numpy as jnp
from jax.experimental import pallas as pl
from jax.experimental.pallas import tpu as pltpu

_LANE = 128
_SUBLANE = 8
_NEG = -1e30  # mask fill for non-skill lanes in the softmax max/exp (f32-safe)


def _round_up(x, m):
    return (x + m - 1) // m * m


def _high_policy_kernel(state_ref, w1_ref, b1_ref, w2_ref, b2_ref,
                        w3t_ref, b3t_ref, out_ref, *, n_skills):
    x = state_ref[...]                       # (tb, n_states), mxu dtype

    # fc1 + ReLU  (f32 accumulate, f32 elementwise)
    h1 = jnp.dot(x, w1_ref[...], preferred_element_type=jnp.float32) + b1_ref[...]
    h1 = jnp.maximum(h1, 0.0)

    # fc2 + ReLU
    h2 = jnp.dot(h1.astype(w2_ref.dtype), w2_ref[...],
                 preferred_element_type=jnp.float32) + b2_ref[...]
    h2 = jnp.maximum(h2, 0.0)

    # Fused fc3 + termination head: one MXU push onto a packed 128-lane slab.
    # Lanes [0, n_skills) = fc3 logits, [n_skills, 2*n_skills) = termination.
    z = jnp.dot(h2.astype(w3t_ref.dtype), w3t_ref[...],
                preferred_element_type=jnp.float32) + b3t_ref[...]

    lane = jax.lax.broadcasted_iota(jnp.int32, z.shape, dimension=1)
    is_skill = lane < n_skills

    # Masked softmax over the skill lanes only (term/pad lanes excluded).
    masked = jnp.where(is_skill, z, _NEG)
    m = jnp.max(masked, axis=-1, keepdims=True)
    e = jnp.exp(masked - m)                  # exp(-1e30 - m) == 0 on non-skill lanes
    s = jnp.sum(e, axis=-1, keepdims=True)
    probs = e / s                            # exact divide: probs sum to 1 tightly

    # Single unmasked 128-lane store: probs on skill lanes, raw z elsewhere
    # (term logits live in lanes [n_skills, 2*n_skills)).
    out_ref[...] = jnp.where(is_skill, probs, z).astype(out_ref.dtype)


def prepare_params(params, n_states, n_skills, n_hidden, *,
                   mxu_dtype=jnp.float32):
    """One-time fuse/pad/cast of the weights (hoisted out of the per-call path).

    mxu_dtype=jnp.bfloat16 is the fast path on v6e/v7x (f32 accumulation and
    f32 elementwise are kept inside the kernel).  Biases stay f32.
    """
    h_pad = _round_up(n_hidden, _LANE)
    out_pad = _round_up(2 * n_skills, _LANE)   # packed heads: 128 when 2k <= 128

    def pad2(a, rows, cols):
        return jnp.pad(a, ((0, rows - a.shape[0]), (0, cols - a.shape[1])))

    w1 = pad2(params["w1"], n_states, h_pad).astype(mxu_dtype)
    b1 = pad2(params["b1"], 1, h_pad).astype(jnp.float32)
    w2 = pad2(params["w2"], h_pad, h_pad).astype(mxu_dtype)
    b2 = pad2(params["b2"], 1, h_pad).astype(jnp.float32)

    # Fused, packed head matrix: fc3 -> lanes [0, k), termination -> [k, 2k).
    w3t = jnp.zeros((h_pad, out_pad), jnp.float32)
    w3t = w3t.at[:n_hidden, :n_skills].set(params["w3"])
    w3t = w3t.at[:n_hidden, n_skills:2 * n_skills].set(params["wt"])
    b3t = jnp.zeros((1, out_pad), jnp.float32)
    b3t = b3t.at[:, :n_skills].set(params["b3"])
    b3t = b3t.at[:, n_skills:2 * n_skills].set(params["bt"])

    return {
        "w1": w1, "b1": b1, "w2": w2, "b2": b2,
        "w3t": w3t.astype(mxu_dtype), "b3t": b3t,
        "n_states": n_states, "n_skills": n_skills,
        "h_pad": h_pad, "out_pad": out_pad, "mxu_dtype": mxu_dtype,
    }


def high_policy_net_forward(state, prepared, *, tile_b=512, min_blocks=1):
    """state: (B, n_states) f32. Returns (softmax probs, termination logits).

    tile_b: batch rows per grid step (sweep 512-2048 for big batches).
    min_blocks: set to 2 on v7x so both TensorCores get a grid block.
    """
    B, n_states = state.shape
    assert n_states == prepared["n_states"]
    n_skills = prepared["n_skills"]
    h_pad = prepared["h_pad"]
    out_pad = prepared["out_pad"]
    mxu_dtype = prepared["mxu_dtype"]

    # Batch tiling only (feature dim stays at its natural width).
    b_pad = _round_up(B, _SUBLANE)
    tb = min(tile_b, b_pad)
    if min_blocks > 1:  # ensure >=min_blocks grid steps (v7x: 2 TensorCores)
        tb = min(tb, max(_SUBLANE, _round_up(pl.cdiv(b_pad, min_blocks), _SUBLANE)))
    b_pad = _round_up(b_pad, tb)
    n_blocks = b_pad // tb

    x = jnp.pad(state.astype(mxu_dtype), ((0, b_pad - B), (0, 0)))

    kernel = functools.partial(_high_policy_kernel, n_skills=n_skills)
    resident = lambda i: (0, 0)   # weights/biases stay VMEM-resident across steps

    out = pl.pallas_call(
        kernel,
        out_shape=jax.ShapeDtypeStruct((b_pad, out_pad), jnp.float32),
        grid=(n_blocks,),
        in_specs=[
            pl.BlockSpec((tb, n_states), lambda i: (i, 0)),   # state tile (no lane pad)
            pl.BlockSpec((n_states, h_pad), resident),        # w1
            pl.BlockSpec((1, h_pad), resident),               # b1 (f32)
            pl.BlockSpec((h_pad, h_pad), resident),           # w2
            pl.BlockSpec((1, h_pad), resident),               # b2 (f32)
            pl.BlockSpec((h_pad, out_pad), resident),         # packed [w3 | wt]
            pl.BlockSpec((1, out_pad), resident),             # packed [b3 | bt] (f32)
        ],
        out_specs=pl.BlockSpec((tb, out_pad), lambda i: (i, 0)),
        compiler_params=pltpu.CompilerParams(
            dimension_semantics=("parallel",),
            vmem_limit_bytes=32 * 1024 * 1024),  # safe budget on v5e/v6e/v7x
    )(x, prepared["w1"], prepared["b1"], prepared["w2"], prepared["b2"],
      prepared["w3t"], prepared["b3t"])

    # Strip batch padding and unpack the single slab.
    probs = out[:B, :n_skills]
    term = out[:B, n_skills:2 * n_skills]
    return probs, term


def init_params(key, n_states, n_skills, n_hidden):
    """PyTorch-Linear-style init: U(-1/sqrt(fan_in), 1/sqrt(fan_in))."""
    ks = jax.random.split(key, 8)

    def linear(kw, kb, fan_in, fan_out):
        bound = 1.0 / jnp.sqrt(jnp.float32(fan_in))
        w = jax.random.uniform(kw, (fan_in, fan_out), jnp.float32, -bound, bound)
        b = jax.random.uniform(kb, (1, fan_out), jnp.float32, -bound, bound)
        return w, b

    w1, b1 = linear(ks[0], ks[1], n_states, n_hidden)
    w2, b2 = linear(ks[2], ks[3], n_hidden, n_hidden)
    w3, b3 = linear(ks[4], ks[5], n_hidden, n_skills)
    wt, bt = linear(ks[6], ks[7], n_hidden, n_skills)
    return {"w1": w1, "b1": b1, "w2": w2, "b2": b2,
            "w3": w3, "b3": b3, "wt": wt, "bt": bt}


def reference_forward(state, p):
    """Plain-JAX reference of the PyTorch forward."""
    h1 = jnp.maximum(state @ p["w1"] + p["b1"], 0.0)
    h2 = jnp.maximum(h1 @ p["w2"] + p["b2"], 0.0)
    probs = jax.nn.softmax(h2 @ p["w3"] + p["b3"], axis=1)
    term = h2 @ p["wt"] + p["bt"]
    return probs, term


if __name__ == "__main__":
    n_states, n_skills, n_hidden = 16, 8, 32
    batch = 2

    key = jax.random.PRNGKey(0)
    k_param, k_state = jax.random.split(key)

    params = init_params(k_param, n_states, n_skills, n_hidden)
    state = jax.random.normal(k_state, (batch, n_states), jnp.float32)

    ref_probs, ref_term = reference_forward(state, params)

    # --- f32 MXU path (all generations) ---
    prep32 = prepare_params(params, n_states, n_skills, n_hidden,
                            mxu_dtype=jnp.float32)
    probs, term = jax.block_until_ready(high_policy_net_forward(state, prep32))
    assert probs.shape == (batch, n_skills) and term.shape == (batch, n_skills)
    assert jnp.allclose(probs, ref_probs, atol=1e-3, rtol=1e-3)
    assert jnp.allclose(term, ref_term, atol=1e-3, rtol=1e-3)
    assert jnp.allclose(jnp.sum(probs, axis=1), 1.0, atol=1e-5)  # exact divide

    # --- bf16 MXU path (v6e/v7x fast path; f32 accumulate + f32 softmax) ---
    prep16 = prepare_params(params, n_states, n_skills, n_hidden,
                            mxu_dtype=jnp.bfloat16)
    probs16, term16 = jax.block_until_ready(high_policy_net_forward(state, prep16))
    assert jnp.allclose(probs16, ref_probs, atol=5e-2, rtol=5e-2)
    assert jnp.allclose(term16, ref_term, atol=5e-2, rtol=5e-2)
    assert jnp.allclose(jnp.sum(probs16, axis=1), 1.0, atol=1e-4)

    # TODO(synk): get_termination (sigmoid of a single term logit + Bernoulli
    # sample / >0.5 threshold, returning a Python bool) is host-side control
    # flow and stays outside the kernel.
    print("KERNEL_OK")
</pallas_src>

<mosaic_0001>
module attributes {stable_mosaic.version = 11 : i64} {
  func.func @_high_policy_kernel(%arg0: i32, %arg1: memref<8x16xf32, #tpu.memory_space<vmem>>, %arg2: memref<16x128xf32, #tpu.memory_space<vmem>>, %arg3: memref<1x128xf32, #tpu.memory_space<vmem>>, %arg4: memref<128x128xf32, #tpu.memory_space<vmem>>, %arg5: memref<1x128xf32, #tpu.memory_space<vmem>>, %arg6: memref<128x128xf32, #tpu.memory_space<vmem>>, %arg7: memref<1x128xf32, #tpu.memory_space<vmem>>, %arg8: memref<8x128xf32, #tpu.memory_space<vmem>>) attributes {dimension_semantics = [#tpu.dimension_semantics<parallel>], iteration_bounds = array<i64: 1>, scalar_prefetch = 0 : i64, scratch_operands = 0 : i64, tpu.core_type = #tpu.core_type<tc>, window_params = [{transform_indices = @transform_0, window_bounds = array<i64: 8, 16>}, {pipeline_mode = #tpu.pipeline_mode<synchronous>, transform_indices = @transform_1, window_bounds = array<i64: 16, 128>}, {pipeline_mode = #tpu.pipeline_mode<synchronous>, transform_indices = @transform_2, window_bounds = array<i64: 1, 128>}, {pipeline_mode = #tpu.pipeline_mode<synchronous>, transform_indices = @transform_3, window_bounds = array<i64: 128, 128>}, {pipeline_mode = #tpu.pipeline_mode<synchronous>, transform_indices = @transform_4, window_bounds = array<i64: 1, 128>}, {pipeline_mode = #tpu.pipeline_mode<synchronous>, transform_indices = @transform_5, window_bounds = array<i64: 128, 128>}, {pipeline_mode = #tpu.pipeline_mode<synchronous>, transform_indices = @transform_6, window_bounds = array<i64: 1, 128>}, {transform_indices = @transform_7, window_bounds = array<i64: 8, 128>}]} {
    %c0 = arith.constant 0 : index
    %c0_0 = arith.constant 0 : index
    %0 = vector.load %arg1[%c0, %c0_0] : memref<8x16xf32, #tpu.memory_space<vmem>>, vector<8x16xf32>
    %c0_1 = arith.constant 0 : index
    %c0_2 = arith.constant 0 : index
    %1 = vector.load %arg2[%c0_1, %c0_2] : memref<16x128xf32, #tpu.memory_space<vmem>>, vector<16x128xf32>
    %cst = arith.constant dense<0.000000e+00> : vector<8x128xf32>
    %2 = tpu.matmul %0, %1, %cst {dimension_numbers = #tpu.dot_dimension_numbers<[1], [0], [0], [1], [0, 0, 1, 1], [], []>} : vector<8x16xf32>, vector<16x128xf32>, vector<8x128xf32> -> vector<8x128xf32>
    %c0_3 = arith.constant 0 : index
    %c0_4 = arith.constant 0 : index
    %3 = vector.load %arg3[%c0_3, %c0_4] : memref<1x128xf32, #tpu.memory_space<vmem>>, vector<1x128xf32>
    %4 = vector.broadcast %3 : vector<1x128xf32> to vector<8x128xf32>
    %5 = arith.addf %2, %4 : vector<8x128xf32>
    %cst_5 = arith.constant 0.000000e+00 : f32
    %6 = vector.broadcast %cst_5 : f32 to vector<8x128xf32>
    %7 = arith.maximumf %5, %6 : vector<8x128xf32>
    %c0_6 = arith.constant 0 : index
    %c0_7 = arith.constant 0 : index
    %8 = vector.load %arg4[%c0_6, %c0_7] : memref<128x128xf32, #tpu.memory_space<vmem>>, vector<128x128xf32>
    %cst_8 = arith.constant dense<0.000000e+00> : vector<8x128xf32>
    %9 = tpu.matmul %7, %8, %cst_8 {dimension_numbers = #tpu.dot_dimension_numbers<[1], [0], [0], [1], [0, 0, 1, 1], [], []>} : vector<8x128xf32>, vector<128x128xf32>, vector<8x128xf32> -> vector<8x128xf32>
    %c0_9 = arith.constant 0 : index
    %c0_10 = arith.constant 0 : index
    %10 = vector.load %arg5[%c0_9, %c0_10] : memref<1x128xf32, #tpu.memory_space<vmem>>, vector<1x128xf32>
    %11 = vector.broadcast %10 : vector<1x128xf32> to vector<8x128xf32>
    %12 = arith.addf %9, %11 : vector<8x128xf32>
    %cst_11 = arith.constant 0.000000e+00 : f32
    %13 = vector.broadcast %cst_11 : f32 to vector<8x128xf32>
    %14 = arith.maximumf %12, %13 : vector<8x128xf32>
    %c0_12 = arith.constant 0 : index
    %c0_13 = arith.constant 0 : index
    %15 = vector.load %arg6[%c0_12, %c0_13] : memref<128x128xf32, #tpu.memory_space<vmem>>, vector<128x128xf32>
    %cst_14 = arith.constant dense<0.000000e+00> : vector<8x128xf32>
    %16 = tpu.matmul %14, %15, %cst_14 {dimension_numbers = #tpu.dot_dimension_numbers<[1], [0], [0], [1], [0, 0, 1, 1], [], []>} : vector<8x128xf32>, vector<128x128xf32>, vector<8x128xf32> -> vector<8x128xf32>
    %c0_15 = arith.constant 0 : index
    %c0_16 = arith.constant 0 : index
    %17 = vector.load %arg7[%c0_15, %c0_16] : memref<1x128xf32, #tpu.memory_space<vmem>>, vector<1x128xf32>
    %18 = vector.broadcast %17 : vector<1x128xf32> to vector<8x128xf32>
    %19 = arith.addf %16, %18 : vector<8x128xf32>
    %20 = tpu.iota {dimensions = array<i32: 1>} : vector<8x128xi32>
    %c8_i32 = arith.constant 8 : i32
    %21 = vector.broadcast %c8_i32 : i32 to vector<8x128xi32>
    %22 = arith.cmpi slt, %20, %21 : vector<8x128xi32>
    %cst_17 = arith.constant -1.000000e+30 : f32
    %23 = vector.broadcast %cst_17 : f32 to vector<8x128xf32>
    %24 = arith.select %22, %19, %23 : vector<8x128xi1>, vector<8x128xf32>
    %cst_18 = arith.constant dense<0xFF800000> : vector<8xf32>
    %25 = vector.multi_reduction <maximumf>, %24, %cst_18 [1] : vector<8x128xf32> to vector<8xf32>
    %26 = vector.shape_cast %25 : vector<8xf32> to vector<8x1xf32>
    %27 = vector.broadcast %26 : vector<8x1xf32> to vector<8x128xf32>
    %28 = arith.subf %24, %27 : vector<8x128xf32>
    %29 = math.exp %28 : vector<8x128xf32>
    %cst_19 = arith.constant dense<0.000000e+00> : vector<8xf32>
    %30 = vector.multi_reduction <add>, %29, %cst_19 [1] : vector<8x128xf32> to vector<8xf32>
    %31 = vector.shape_cast %30 : vector<8xf32> to vector<8x1xf32>
    %32 = vector.broadcast %31 : vector<8x1xf32> to vector<8x128xf32>
    %33 = arith.divf %29, %32 : vector<8x128xf32>
    %34 = arith.select %22, %33, %19 : vector<8x128xi1>, vector<8x128xf32>
    %c0_20 = arith.constant 0 : index
    %c0_21 = arith.constant 0 : index
    %35 = vector.load %arg8[%c0_20, %c0_21] : memref<8x128xf32, #tpu.memory_space<vmem>>, vector<8x128xf32>
    tpu.vector_store %arg8[%c0_20, %c0_21], %34 {strides = array<i32>} : memref<8x128xf32, #tpu.memory_space<vmem>>, vector<8x128xf32>,
    return
  }
  func.func @transform_0(%arg0: i32) -> (i32, i32) {
    %c0_i32 = arith.constant 0 : i32
    %c0_i32_0 = arith.constant 0 : i32
    return %arg0, %c0_i32 : i32, i32
  }
  func.func @transform_1(%arg0: i32) -> (i32, i32) {
    %c0_i32 = arith.constant 0 : i32
    %c0_i32_0 = arith.constant 0 : i32
    %c0_i32_1 = arith.constant 0 : i32
    return %c0_i32, %c0_i32_0 : i32, i32
  }
  func.func @transform_2(%arg0: i32) -> (i32, i32) {
    %c0_i32 = arith.constant 0 : i32
    %c0_i32_0 = arith.constant 0 : i32
    %c0_i32_1 = arith.constant 0 : i32
    return %c0_i32, %c0_i32_0 : i32, i32
  }
  func.func @transform_3(%arg0: i32) -> (i32, i32) {
    %c0_i32 = arith.constant 0 : i32
    %c0_i32_0 = arith.constant 0 : i32
    %c0_i32_1 = arith.constant 0 : i32
    return %c0_i32, %c0_i32_0 : i32, i32
  }
  func.func @transform_4(%arg0: i32) -> (i32, i32) {
    %c0_i32 = arith.constant 0 : i32
    %c0_i32_0 = arith.constant 0 : i32
    %c0_i32_1 = arith.constant 0 : i32
    return %c0_i32, %c0_i32_0 : i32, i32
  }
  func.func @transform_5(%arg0: i32) -> (i32, i32) {
    %c0_i32 = arith.constant 0 : i32
    %c0_i32_0 = arith.constant 0 : i32
    %c0_i32_1 = arith.constant 0 : i32
    return %c0_i32, %c0_i32_0 : i32, i32
  }
  func.func @transform_6(%arg0: i32) -> (i32, i32) {
    %c0_i32 = arith.constant 0 : i32
    %c0_i32_0 = arith.constant 0 : i32
    %c0_i32_1 = arith.constant 0 : i32
    return %c0_i32, %c0_i32_0 : i32, i32
  }
  func.func @transform_7(%arg0: i32) -> (i32, i32) {
    %c0_i32 = arith.constant 0 : i32
    %c0_i32_0 = arith.constant 0 : i32
    return %arg0, %c0_i32 : i32, i32
  }
}

</mosaic_0001>

<llo_original>
// kernel: tpu_custom_call.1
$region0: #{tpu_custom_call.1}
  #allocation0 [shape = 'u32[]', space=smem, size = 0x4, offset = 0x4, fixed_abs, tag = 'smem constant byte address 0x4 - core index']
  #allocation1 [shape = 'u32[72,128]{1,0:T(1,128)}', space=vmem, size = 0x9000, scoped, tag = 'internal scratch']
  %s0 = inlined_call_operand.hbm [shape: f32[8,16], index: 0, kind: input, shape index: {}]
  %s1 = inlined_call_operand.hbm [shape: f32[16,128], index: 1, kind: input, shape index: {}]
  %s2 = inlined_call_operand.vmem [shape: f32[1,128], index: 2, kind: input, shape index: {}]
  %s3 = inlined_call_operand.hbm [shape: f32[128,128], index: 3, kind: input, shape index: {}]
  %s4 = inlined_call_operand.vmem [shape: f32[1,128], index: 4, kind: input, shape index: {}]
  %s5 = inlined_call_operand.hbm [shape: f32[128,128], index: 5, kind: input, shape index: {}]
  %s6 = inlined_call_operand.vmem [shape: f32[1,128], index: 6, kind: input, shape index: {}]
  %s7 = inlined_call_operand.hbm [shape: f32[8,128], index: 7, kind: output, shape index: {}]
  %s8 = sld [smem:[#allocation0]]
  $region54: #{tpu_custom_call.1} parent=0
    _
  %s10 = ssub.s32 1, %s8
  %s11 = scalar_select 0, %s10, %s8
  $region1: #{tpu_custom_call.1} parent=0
    #allocation2 [shape = 'u8[4096]{0}', space=vmem, size = 0x1000, scoped, tag = 'input window, operand 0, single buffered']
    #allocation3 [shape = 's32[1]{0}', space=sflag, size = 0x4, scoped, tag = 'scoped memory for tpu_custom_call.1']
    #allocation4 [shape = 's32[1]{0}', space=sflag, size = 0x4, scoped, tag = 'scoped memory for tpu_custom_call.1']
    #allocation5 [shape = 'u8[8192]{0}', space=vmem, size = 0x2000, scoped, tag = 'input window, operand 1, single buffered']
    #allocation6 [shape = 's32[1]{0}', space=sflag, size = 0x4, scoped, tag = 'scoped memory for tpu_custom_call.1']
    #allocation7 [shape = 'u8[65536]{0}', space=vmem, size = 0x10000, scoped, tag = 'input window, operand 3, single buffered']
    #allocation8 [shape = 'u8[65536]{0}', space=vmem, size = 0x10000, scoped, tag = 'input window, operand 5, single buffered']
    #allocation9 [shape = 's32[1]{0}', space=sflag, size = 0x4, scoped, tag = 'scoped memory for tpu_custom_call.1']
    #allocation10 [shape = 'u8[4096]{0}', space=vmem, size = 0x1000, scoped, tag = 'output window, operand 0, single buffered']
    %12 = vsyncpa [#allocation3], 0
    %13 = vsyncpa [#allocation6], 0
    %14 = vsyncpa [#allocation9], 0
    %15 = vsyncpa [#allocation4], 0
    // Predicated region
    $region2: #{tpu_custom_call.1} parent=1 // pred_check
      _
    $region3: #{tpu_custom_call.1} parent=1 // pred_check_branch
      %17 = sbr.rel (0) target = $region5
    $region4: #{tpu_custom_call.1} parent=1 // pred_region
      %19 = vsyncadd [#allocation3], 0
      %s21 = sshll.u32 %s0, 4
      %s22 = int_to_ptr.hbm [resolvable:$true] %s21
      %s23 = sshll.u32 [#allocation2], 4
      %s24 = int_to_ptr.vmem [resolvable:$true] %s23
      %26 = dma.hbm_to_vmem [thread:$0]  %s22, 128, %s24, [#allocation3]
    $region5: #{tpu_custom_call.1} parent=1 // pred_fallthru
      _
    // Predicated region
    $region6: #{tpu_custom_call.1} parent=1 // pred_check
      _
    $region7: #{tpu_custom_call.1} parent=1 // pred_check_branch
      %28 = sbr.rel (0) target = $region9
    $region8: #{tpu_custom_call.1} parent=1 // pred_region
      %30 = vsyncadd [#allocation6], 0
      %s31 = sshll.u32 %s1, 4
      %s32 = int_to_ptr.hbm [resolvable:$true] %s31
      %s33 = sshll.u32 [#allocation5], 4
      %s34 = int_to_ptr.vmem [resolvable:$true] %s33
      %39 = dma.hbm_to_vmem [thread:$0]  %s32, 256, %s34, [#allocation6], 128, 128, 8
    $region9: #{tpu_custom_call.1} parent=1 // pred_fallthru
      _
    // Predicated region
    $region10: #{tpu_custom_call.1} parent=1 // pred_check
      _
    $region11: #{tpu_custom_call.1} parent=1 // pred_check_branch
      %41 = sbr.rel (0) target = $region13
    $region12: #{tpu_custom_call.1} parent=1 // pred_region
      _
    $region13: #{tpu_custom_call.1} parent=1 // pred_fallthru
      _
    // Predicated region
    $region14: #{tpu_custom_call.1} parent=1 // pred_check
      _
    $region15: #{tpu_custom_call.1} parent=1 // pred_check_branch
      %43 = sbr.rel (0) target = $region17
    $region16: #{tpu_custom_call.1} parent=1 // pred_region
      %45 = vsyncadd [#allocation6], 0
      %s46 = sshll.u32 %s3, 4
      %s47 = int_to_ptr.hbm [resolvable:$true] %s46
      %s48 = sshll.u32 [#allocation7], 4
      %s49 = int_to_ptr.vmem [resolvable:$true] %s48
      %54 = dma.hbm_to_vmem [thread:$0]  %s47, 2048, %s49, [#allocation6], 128, 128, 8
    $region17: #{tpu_custom_call.1} parent=1 // pred_fallthru
      _
    // Predicated region
    $region18: #{tpu_custom_call.1} parent=1 // pred_check
      _
    $region19: #{tpu_custom_call.1} parent=1 // pred_check_branch
      %56 = sbr.rel (0) target = $region21
    $region20: #{tpu_custom_call.1} parent=1 // pred_region
      _
    $region21: #{tpu_custom_call.1} parent=1 // pred_fallthru
      _
    // Predicated region
    $region22: #{tpu_custom_call.1} parent=1 // pred_check
      _
    $region23: #{tpu_custom_call.1} parent=1 // pred_check_branch
      %58 = sbr.rel (0) target = $region25
    $region24: #{tpu_custom_call.1} parent=1 // pred_region
      %60 = vsyncadd [#allocation9], 0
      %s61 = sshll.u32 %s5, 4
      %s62 = int_to_ptr.hbm [resolvable:$true] %s61
      %s63 = sshll.u32 [#allocation8], 4
      %s64 = int_to_ptr.vmem [resolvable:$true] %s63
      %69 = dma.hbm_to_vmem [thread:$0]  %s62, 2048, %s64, [#allocation9], 128, 128, 8
    $region25: #{tpu_custom_call.1} parent=1 // pred_fallthru
      _
    // Predicated region
    $region26: #{tpu_custom_call.1} parent=1 // pred_check
      _
    $region27: #{tpu_custom_call.1} parent=1 // pred_check_branch
      %71 = sbr.rel (0) target = $region29
    $region28: #{tpu_custom_call.1} parent=1 // pred_region
      _
    $region29: #{tpu_custom_call.1} parent=1 // pred_fallthru
      _
    // Predicated region
    $region30: #{tpu_custom_call.1} parent=1 // pred_check
      _
    $region31: #{tpu_custom_call.1} parent=1 // pred_check_branch
      %73 = sbr.rel (0) target = $region33
    $region32: #{tpu_custom_call.1} parent=1 // pred_region
      %75 = dma.done [#allocation3], 128
    $region33: #{tpu_custom_call.1} parent=1 // pred_fallthru
      _
    // Predicated region
    $region34: #{tpu_custom_call.1} parent=1 // pred_check
      _
    $region35: #{tpu_custom_call.1} parent=1 // pred_check_branch
      %77 = sbr.rel (0) target = $region37
    $region36: #{tpu_custom_call.1} parent=1 // pred_region
      %79 = dma.done [#allocation6], 256
    $region37: #{tpu_custom_call.1} parent=1 // pred_fallthru
      _
    // Predicated region
    $region38: #{tpu_custom_call.1} parent=1 // pred_check
      _
    $region39: #{tpu_custom_call.1} parent=1 // pred_check_branch
      %81 = sbr.rel (0) target = $region41
    $region40: #{tpu_custom_call.1} parent=1 // pred_region
      %83 = dma.done [#allocation6], 2048
    $region41: #{tpu_custom_call.1} parent=1 // pred_fallthru
      _
    // Predicated region
    $region42: #{tpu_custom_call.1} parent=1 // pred_check
      _
    $region43: #{tpu_custom_call.1} parent=1 // pred_check_branch
      %85 = sbr.rel (0) target = $region45
    $region44: #{tpu_custom_call.1} parent=1 // pred_region
      %87 = dma.done [#allocation9], 2048
    $region45: #{tpu_custom_call.1} parent=1 // pred_fallthru
      _
    %v88 = vld [vmem:[#allocation2] sm:$0xff]
    %v89 = vld [vmem:[#allocation5] sm:$0xff]
    %v90 = vld [vmem:[#allocation5 + $0x8] sm:$0xff]
    %v91 = vld [vmem:[%s2] sm:$0x1]
    %v93 = vperm.slane %v91, 0
    %vm95 = vcmask 130048
    %v97 = vsel %vm95, %v88, 0
    %99 = vmatpush.msra.mxu0 0.0
    %100 = vmatpush.msra.mxu0 0.0
    %101 = vmatpush.msra.mxu0 0.0
    %102 = vmatpush.msra.mxu0 0.0
    %103 = vmatpush.msra.mxu0 0.0
    %104 = vmatpush.msra.mxu0 0.0
    %105 = vmatpush.msra.mxu0 0.0
    %106 = vmatpush.msra.mxu0 0.0
    %107 = vmatpush.msra.mxu0 0.0
    %108 = vmatpush.msra.mxu0 0.0
    %109 = vmatpush.msra.mxu0 0.0
    %110 = vmatpush.msra.mxu0 0.0
    %111 = vmatpush.msra.mxu0 0.0
    %112 = vmatpush.msra.mxu0 0.0
    %113 = vmatpush.msra.mxu0 %v90
    %114 = vmatpush.msra.mxu0 %v89
    %115 = vmatmul.f32.gmra.mxu0 %v97
    %v116 = vpop.f32.mrf.mxu0
    %v117 = vadd.f32 %v93, %v116
    %118 = vdwg.mxu0
    %v119 = vmax.f32 %v117, 0.0
    %v120 = vld [vmem:[#allocation7] sm:$0xff]
    %v121 = vld [vmem:[#allocation7 + $0x8] sm:$0xff]
    %v122 = vld [vmem:[#allocation7 + $0x10] sm:$0xff]
    %v123 = vld [vmem:[#allocation7 + $0x18] sm:$0xff]
    %v124 = vld [vmem:[#allocation7 + $0x20] sm:$0xff]
    %v125 = vld [vmem:[#allocation7 + $0x28] sm:$0xff]
    %v126 = vld [vmem:[#allocation7 + $0x30] sm:$0xff]
    %v127 = vld [vmem:[#allocation7 + $0x38] sm:$0xff]
    %v128 = vld [vmem:[#allocation7 + $0x40] sm:$0xff]
    %v129 = vld [vmem:[#allocation7 + $0x48] sm:$0xff]
    %v130 = vld [vmem:[#allocation7 + $0x50] sm:$0xff]
    %v131 = vld [vmem:[#allocation7 + $0x58] sm:$0xff]
    %v132 = vld [vmem:[#allocation7 + $0x60] sm:$0xff]
    %v133 = vld [vmem:[#allocation7 + $0x68] sm:$0xff]
    %v134 = vld [vmem:[#allocation7 + $0x70] sm:$0xff]
    %v135 = vld [vmem:[#allocation7 + $0x78] sm:$0xff]
    %v136 = vld [vmem:[%s4] sm:$0x1]
    %v138 = vperm.slane %v136, 0
    %140 = vmatpush.msra.mxu0 %v135
    %141 = vmatpush.msra.mxu0 %v134
    %142 = vmatpush.msra.mxu0 %v133
    %143 = vmatpush.msra.mxu0 %v132
    %144 = vmatpush.msra.mxu0 %v131
    %145 = vmatpush.msra.mxu0 %v130
    %146 = vmatpush.msra.mxu0 %v129
    %147 = vmatpush.msra.mxu0 %v128
    %148 = vmatpush.msra.mxu0 %v127
    %149 = vmatpush.msra.mxu0 %v126
    %150 = vmatpush.msra.mxu0 %v125
    %151 = vmatpush.msra.mxu0 %v124
    %152 = vmatpush.msra.mxu0 %v123
    %153 = vmatpush.msra.mxu0 %v122
    %154 = vmatpush.msra.mxu0 %v121
    %155 = vmatpush.msra.mxu0 %v120
    %156 = vmatmul.f32.gmra.mxu0 %v119
    %v157 = vpop.f32.mrf.mxu0
    %v158 = vadd.f32 %v138, %v157
    %159 = vdwg.mxu0
    %v160 = vmax.f32 %v158, 0.0
    %v161 = vld [vmem:[#allocation8] sm:$0xff]
    %v162 = vld [vmem:[#allocation8 + $0x8] sm:$0xff]
    %v163 = vld [vmem:[#allocation8 + $0x10] sm:$0xff]
    %v164 = vld [vmem:[#allocation8 + $0x18] sm:$0xff]
    %v165 = vld [vmem:[#allocation8 + $0x20] sm:$0xff]
    %v166 = vld [vmem:[#allocation8 + $0x28] sm:$0xff]
    %v167 = vld [vmem:[#allocation8 + $0x30] sm:$0xff]
    %v168 = vld [vmem:[#allocation8 + $0x38] sm:$0xff]
    %v169 = vld [vmem:[#allocation8 + $0x40] sm:$0xff]
    %v170 = vld [vmem:[#allocation8 + $0x48] sm:$0xff]
    %v171 = vld [vmem:[#allocation8 + $0x50] sm:$0xff]
    %v172 = vld [vmem:[#allocation8 + $0x58] sm:$0xff]
    %v173 = vld [vmem:[#allocation8 + $0x60] sm:$0xff]
    %v174 = vld [vmem:[#allocation8 + $0x68] sm:$0xff]
    %v175 = vld [vmem:[#allocation8 + $0x70] sm:$0xff]
    %v176 = vld [vmem:[#allocation8 + $0x78] sm:$0xff]
    %v177 = vld [vmem:[%s6] sm:$0x1]
    %v179 = vperm.slane %v177, 0
    %181 = vmatpush.msra.mxu0 %v176
    %182 = vmatpush.msra.mxu0 %v175
    %183 = vmatpush.msra.mxu0 %v174
    %184 = vmatpush.msra.mxu0 %v173
    %185 = vmatpush.msra.mxu0 %v172
    %186 = vmatpush.msra.mxu0 %v171
    %187 = vmatpush.msra.mxu0 %v170
    %188 = vmatpush.msra.mxu0 %v169
    %189 = vmatpush.msra.mxu0 %v168
    %190 = vmatpush.msra.mxu0 %v167
    %191 = vmatpush.msra.mxu0 %v166
    %192 = vmatpush.msra.mxu0 %v165
    %193 = vmatpush.msra.mxu0 %v164
    %194 = vmatpush.msra.mxu0 %v163
    %195 = vmatpush.msra.mxu0 %v162
    %196 = vmatpush.msra.mxu0 %v161
    %197 = vmatmul.f32.gmra.mxu0 %v160
    %v198 = vpop.f32.mrf.mxu0
    %v199 = vadd.f32 %v179, %v198
    %200 = vdwg.mxu0
    %v201 = vlaneseq
    %v202 = vand.u32 %v201, 127
    %vm203 = vcmp.lt.s32.totalorder %v202, 8
    %v204 = vsel %vm203, %v199, -1e+30
    %205 = vmax.xlane.f32.xlu0 %v204
    %v206 = vpop.xlane.xlu0 %205
    %v207 = vsub.f32 %v204, %v206
    %v208 = vmul.f32 %v207, 1.442695
    %v209 = vpow.pop %v208
    %210 = vadd.xlane.f32.xlu0 %v209
    %v211 = vpop.xlane.xlu0 %210
    %v212 = vrcp.pop %v211
    %v213 = vmul.f32 %v211, %v212
    %v214 = vsub.f32 1.0, %v213
    %v215 = vmul.f32 %v212, %v214
    %v216 = vadd.f32 %v212, %v215
    %vm217 = vweird.f32 %v211
    %vm218 = vweird.f32 %v212
    %vm219 = vmor %vm217, %vm218
    %v220 = vsel %vm219, %v212, %v216
    %v221 = vand.u32 2147483647, %v211
    %vm222 = vcmp.eq.f32.partialorder %v221, 8.507059e+37
    %v223 = vand.u32 %v211, 2147483648
    %v224 = vor.u32 1.1754944e-38, %v223
    %v225 = vsel %vm222, %v224, %v220
    %v226 = vmul.f32 %v209, %v225
    %v227 = vsel %vm203, %v226, %v199
    %228 = vst [vmem:[#allocation10] sm:$0xff] %v227
    // Predicated region
    $region46: #{tpu_custom_call.1} parent=1 // pred_check
      _
    $region47: #{tpu_custom_call.1} parent=1 // pred_check_branch
      %230 = sbr.rel (0) target = $region49
    $region48: #{tpu_custom_call.1} parent=1 // pred_region
      %232 = vsyncadd [#allocation4], 0
      %s234 = sshll.u32 [#allocation10], 4
      %s235 = int_to_ptr.vmem [resolvable:$true] %s234
      %s236 = sshll.u32 %s7, 4
      %s237 = int_to_ptr.hbm [resolvable:$true] %s236
      %239 = dma.vmem_to_hbm [thread:$0]  %s235, 128, %s237, [#allocation4]
    $region49: #{tpu_custom_call.1} parent=1 // pred_fallthru
      _
    // Predicated region
    $region50: #{tpu_custom_call.1} parent=1 // pred_check
      _
    $region51: #{tpu_custom_call.1} parent=1 // pred_check_branch
      %241 = sbr.rel (0) target = $region53
    $region52: #{tpu_custom_call.1} parent=1 // pred_region
      %243 = dma.done [#allocation4], 128
    $region53: #{tpu_custom_call.1} parent=1 // pred_fallthru
      _
    %244 = vsyncpa [#allocation3], 1
    %245 = vsyncpa [#allocation6], 1
    %246 = vsyncpa [#allocation9], 1
    %247 = vsyncpa [#allocation4], 1

</llo_original>
